<compile_context>
chip_gen: v7x
topology: tpu7x:2x2x1
jax: 0.10.0
libtpu: 0.0.40
codegen_flags: <defaults>
</compile_context>

<pallas_src>
import functools
import math

import jax
import jax.numpy as jnp
from jax.experimental import pallas as pl
from jax.experimental.pallas import tpu as pltpu


def _round_up(a, b):
    return -(-a // b) * b


def _target_block_bytes():
    """~8 MiB blocks on v6e/v7x (32 MiB default scoped VMEM), ~4 MiB on v5e (16 MiB)."""
    try:
        kind = jax.devices()[0].device_kind.lower()
    except Exception:
        kind = ""
    if "v5 lite" in kind or "v5e" in kind or "v5lite" in kind:
        return 4 * 1024 * 1024
    return 8 * 1024 * 1024


def _sum_x_kernel(x_ref, out_ref, *, n, v, rg):
    """Emit a lane-dense (8,128) f32 partial of sum(x) for this (i, j) block.

    Out-of-bounds rows/cols of ragged edge blocks are masked to 0 (the mask
    code is only traced when N/V do not divide the tile sizes).
    """
    i = pl.program_id(0)
    j = pl.program_id(1)
    tn, tv = x_ref.shape

    ragged_rows = (n % tn) != 0
    ragged_cols = (v % tv) != 0

    # Loop-invariant iotas (hoisted; only materialized when actually needed).
    lane = jax.lax.broadcasted_iota(jnp.int32, (rg, 128), 1) if ragged_cols else None
    sub = jax.lax.broadcasted_iota(jnp.int32, (rg, 128), 0) if ragged_rows else None
    row0 = i * tn
    col0 = j * tv

    def row_group(r, part):
        r_base = pl.multiple_of(r * rg, rg)
        rmask = (sub < (n - row0 - r_base)) if ragged_rows else None
        for c in range(tv // 128):
            tile = x_ref[pl.ds(r_base, rg), c * 128:(c + 1) * 128].astype(jnp.float32)
            if ragged_cols:
                m = lane < (v - col0 - c * 128)
                if rmask is not None:
                    m = m & rmask
                tile = jnp.where(m, tile, 0.0)
            elif ragged_rows:
                tile = jnp.where(rmask, tile, 0.0)
            part = part + tile
        return part

    part = jax.lax.fori_loop(0, tn // rg, row_group,
                             jnp.zeros((rg, 128), jnp.float32))

    # Fold the (rg, 128) carry down to one (8, 128) vreg (no-op for f32 inputs).
    out8 = part[0:8, :]
    for k in range(1, rg // 8):
        out8 = out8 + part[k * 8:(k + 1) * 8, :]
    out_ref[0, 0, :, :] = out8


def label_smoothing_loss(x, target, smoothing=0.1):
    """x: (N, V) log-probs (f32 or bf16), target: (N,) ints. Returns scalar f32 loss."""
    n, v = x.shape
    conf = 1.0 - smoothing
    base = smoothing / (v - 1) if v > 1 else 0.0

    # sum_ij p*log(p) is a trace-time constant (skipping zero terms avoids 0*log0).
    plogp = 0.0
    if conf > 0.0:
        plogp += conf * math.log(conf)
    if base > 0.0:
        plogp += (v - 1) * base * math.log(base)
    plogp_total = n * plogp

    itemsize = jnp.dtype(x.dtype).itemsize
    rg = max(8, 32 // itemsize)          # sublane rows per packed vreg: 8 f32, 16 bf16
    target_bytes = _target_block_bytes()

    # Lane-dense tiles; no padding of x (ragged cdiv grid + in-kernel masking).
    tv = min(_round_up(v, 128), 8192)
    row_bytes = tv * itemsize
    tn_fit = max(rg, (target_bytes // row_bytes) // rg * rg)
    tn = min(_round_up(n, rg), tn_fit)

    grid = (pl.cdiv(n, tn), pl.cdiv(v, tv))

    partials = pl.pallas_call(
        functools.partial(_sum_x_kernel, n=n, v=v, rg=rg),
        out_shape=jax.ShapeDtypeStruct((grid[0], grid[1], 8, 128), jnp.float32),
        grid_spec=pltpu.PrefetchScalarGridSpec(
            num_scalar_prefetch=0,
            grid=grid,
            in_specs=[pl.BlockSpec((tn, tv), lambda i, j: (i, j))],
            out_specs=pl.BlockSpec((1, 1, 8, 128), lambda i, j: (i, j, 0, 0)),
        ),
        compiler_params=pltpu.CompilerParams(
            dimension_semantics=("parallel", "parallel")),
    )(x)

    sum_x = jnp.sum(partials)                                   # = sum_ij x[i,j]

    # N-element gather term done in the wrapper (negligible HBM traffic).
    tgt = target.astype(jnp.int32)
    x_t = jnp.take_along_axis(x, tgt[:, None], axis=1).astype(jnp.float32)
    sum_tgt = jnp.sum(x_t)                                      # = sum_i x[i, target[i]]

    cross = jnp.float32(base) * sum_x + jnp.float32(conf - base) * sum_tgt
    return (jnp.float32(plogp_total) - cross) / jnp.float32(n)


if __name__ == "__main__":
    key = jax.random.PRNGKey(0)
    k1, k2 = jax.random.split(key)

    N, V = 8, 32                       # batch of 8 tokens, vocab/size = 32
    smoothing = 0.1
    logits = jax.random.normal(k1, (N, V), dtype=jnp.float32)
    x = jax.nn.log_softmax(logits, axis=-1)        # module expects log-probs
    target = jax.random.randint(k2, (N,), 0, V, dtype=jnp.int32)

    loss = label_smoothing_loss(x, target, smoothing=smoothing)
    jax.block_until_ready(loss)

    # Plain-JAX reference (same math as the PyTorch module).
    base = smoothing / (V - 1)
    true_dist = jnp.full((N, V), base, dtype=jnp.float32)
    true_dist = true_dist.at[jnp.arange(N), target].set(1.0 - smoothing)
    ref = jnp.sum(true_dist * (jnp.log(true_dist) - x)) / N
    assert jnp.allclose(loss, ref, atol=1e-4, rtol=1e-4), (loss, ref)

    print("KERNEL_OK")
</pallas_src>

<mosaic_0001>
module attributes {stable_mosaic.version = 11 : i64} {
  func.func @_sum_x_kernel(%arg0: i32, %arg1: i32, %arg2: memref<8x128xf32, #tpu.memory_space<vmem>>, %arg3: memref<1x1x8x128xf32, #tpu.memory_space<vmem>>) attributes {dimension_semantics = [#tpu.dimension_semantics<parallel>, #tpu.dimension_semantics<parallel>], iteration_bounds = array<i64: 1, 1>, scalar_prefetch = 0 : i64, scratch_operands = 0 : i64, tpu.core_type = #tpu.core_type<tc>, window_params = [{transform_indices = @transform_0, window_bounds = array<i64: 8, 128>}, {transform_indices = @transform_1, window_bounds = array<i64: 1, 1, 8, 128>}]} {
    %0 = tpu.iota {dimensions = array<i32: 1>} : vector<8x128xi32>
    %c128_i32 = arith.constant 128 : i32
    %1 = arith.muli %arg1, %c128_i32 : i32
    %cst = arith.constant 0.000000e+00 : f32
    %2 = vector.broadcast %cst : f32 to vector<8x128xf32>
    %c0_i32 = arith.constant 0 : i32
    %c8_i32 = arith.constant 8 : i32
    %3 = arith.muli %c0_i32, %c8_i32 : i32
    %4 = tpu.assume_multiple %3, 8 : i32
    %5 = arith.index_cast %4 : i32 to index
    %c0 = arith.constant 0 : index
    %6 = vector.load %arg2[%5, %c0] : memref<8x128xf32, #tpu.memory_space<vmem>>, vector<8x128xf32>
    %c32_i32 = arith.constant 32 : i32
    %7 = arith.subi %c32_i32, %1 : i32
    %c0_i32_0 = arith.constant 0 : i32
    %8 = arith.subi %7, %c0_i32_0 : i32
    %9 = vector.broadcast %8 : i32 to vector<8x128xi32>
    %10 = arith.cmpi slt, %0, %9 : vector<8x128xi32>
    %cst_1 = arith.constant 0.000000e+00 : f32
    %11 = vector.broadcast %cst_1 : f32 to vector<8x128xf32>
    %12 = arith.select %10, %6, %11 : vector<8x128xi1>, vector<8x128xf32>
    %13 = arith.addf %2, %12 : vector<8x128xf32>
    %c1_i32 = arith.constant 1 : i32
    %c0_2 = arith.constant 0 : index
    %c0_3 = arith.constant 0 : index
    %c0_4 = arith.constant 0 : index
    %c0_5 = arith.constant 0 : index
    %14 = vector.load %arg3[%c0_2, %c0_3, %c0_4, %c0_5] : memref<1x1x8x128xf32, #tpu.memory_space<vmem>>, vector<1x1x8x128xf32>
    %15 = vector.shape_cast %14 : vector<1x1x8x128xf32> to vector<8x128xf32>
    %16 = vector.shape_cast %13 : vector<8x128xf32> to vector<1x1x8x128xf32>
    tpu.vector_store %arg3[%c0_2, %c0_3, %c0_4, %c0_5], %16 {strides = array<i32>} : memref<1x1x8x128xf32, #tpu.memory_space<vmem>>, vector<1x1x8x128xf32>,
    return
  }
  func.func @transform_0(%arg0: i32, %arg1: i32) -> (i32, i32) {
    %c0_i32 = arith.constant 0 : i32
    return %arg0, %arg1 : i32, i32
  }
  func.func @transform_1(%arg0: i32, %arg1: i32) -> (i32, i32, i32, i32) {
    %c0_i32 = arith.constant 0 : i32
    %c0_i32_0 = arith.constant 0 : i32
    %c0_i32_1 = arith.constant 0 : i32
    return %arg0, %arg1, %c0_i32, %c0_i32_0 : i32, i32, i32, i32
  }
}

</mosaic_0001>

<llo_original>
// kernel: tpu_custom_call.1
$region0: #{tpu_custom_call.1}
  #allocation0 [shape = 'u32[]', space=smem, size = 0x4, offset = 0x4, fixed_abs, tag = 'smem constant byte address 0x4 - core index']
  #allocation1 [shape = 'u32[144,128]{1,0:T(1,128)}', space=vmem, size = 0x12000, scoped, tag = 'internal scratch']
  %s0 = inlined_call_operand.hbm [shape: f32[8,32], index: 0, kind: input, shape index: {}]
  %s1 = inlined_call_operand.hbm [shape: f32[1,1,8,128], index: 1, kind: output, shape index: {}]
  %s2 = sld [smem:[#allocation0]]
  $region18: #{tpu_custom_call.1} parent=0
    _
  %s4 = ssub.s32 1, %s2
  %s5 = scalar_select 0, %s4, %s2
  $region1: #{tpu_custom_call.1} parent=0
    #allocation2 [shape = 'u8[4096]{0}', space=vmem, size = 0x1000, scoped, tag = 'input window, operand 0, single buffered']
    #allocation3 [shape = 's32[1]{0}', space=sflag, size = 0x4, scoped, tag = 'scoped memory for tpu_custom_call.1']
    #allocation4 [shape = 's32[1]{0}', space=sflag, size = 0x4, scoped, tag = 'scoped memory for tpu_custom_call.1']
    #allocation5 [shape = 'u8[4096]{0}', space=vmem, size = 0x1000, scoped, tag = 'output window, operand 0, single buffered']
    %6 = vsyncpa [#allocation3], 0
    %7 = vsyncpa [#allocation4], 0
    // Predicated region
    $region2: #{tpu_custom_call.1} parent=1 // pred_check
      _
    $region3: #{tpu_custom_call.1} parent=1 // pred_check_branch
      %9 = sbr.rel (0) target = $region5
    $region4: #{tpu_custom_call.1} parent=1 // pred_region
      %s11 = ssub.s32 128, 128
      %12 = vsyncadd [#allocation3], %s11
      %s14 = sshll.u32 [#allocation2], 4
      %s15 = int_to_ptr.vmem [resolvable:$true] %s14
      %17 = dma.hbm_to_vmem [thread:$0]  %s0, 128, %s15, [#allocation3]
    $region5: #{tpu_custom_call.1} parent=1 // pred_fallthru
      _
    // Predicated region
    $region6: #{tpu_custom_call.1} parent=1 // pred_check
      _
    $region7: #{tpu_custom_call.1} parent=1 // pred_check_branch
      %19 = sbr.rel (0) target = $region9
    $region8: #{tpu_custom_call.1} parent=1 // pred_region
      %20 = dma.done [#allocation3], 128
    $region9: #{tpu_custom_call.1} parent=1 // pred_fallthru
      _
    %v21 = vlaneseq
    %v22 = vand.u32 %v21, 127
    %s23 = smul.u32 0, 128
    %v24 = vld [vmem:[#allocation2] sm:$0xff]
    %s25 = ssub.s32 32, %s23
    %v26 = vstv %s25
    %vm27 = vcmp.lt.s32.totalorder %v22, %v26
    %v28 = vsel %vm27, %v24, 0.0
    %v29 = vadd.f32 %v28, 0.0
    %30 = vst [vmem:[#allocation5] sm:$0xff] %v29
    // Predicated region
    $region10: #{tpu_custom_call.1} parent=1 // pred_check
      _
    $region11: #{tpu_custom_call.1} parent=1 // pred_check_branch
      %32 = sbr.rel (0) target = $region13
    $region12: #{tpu_custom_call.1} parent=1 // pred_region
      %s34 = ssub.s32 128, 128
      %35 = vsyncadd [#allocation4], %s34
      %s37 = sshll.u32 [#allocation5], 4
      %s38 = int_to_ptr.vmem [resolvable:$true] %s37
      %40 = dma.vmem_to_hbm [thread:$0]  %s38, 128, %s1, [#allocation4]
    $region13: #{tpu_custom_call.1} parent=1 // pred_fallthru
      _
    // Predicated region
    $region14: #{tpu_custom_call.1} parent=1 // pred_check
      _
    $region15: #{tpu_custom_call.1} parent=1 // pred_check_branch
      %42 = sbr.rel (0) target = $region17
    $region16: #{tpu_custom_call.1} parent=1 // pred_region
      %43 = dma.done [#allocation4], 128
    $region17: #{tpu_custom_call.1} parent=1 // pred_fallthru
      _
    %44 = vsyncpa [#allocation3], 1
    %45 = vsyncpa [#allocation4], 1

</llo_original>
